<compile_context>
chip_gen: v6e
topology: v6e:2x2x1
jax: 0.10.0
libtpu: 0.0.40
codegen_flags: <defaults>
</compile_context>

<pallas_src>
import jax
import jax.numpy as jnp
from jax.experimental import pallas as pl
from jax.experimental.pallas import tpu as pltpu


# -----------------------------------------------------------------------------
# Primary path: aliased no-op (zero HBM traffic, zero compute).
# -----------------------------------------------------------------------------
def _noop_kernel(x_ref, o_ref):
    # Output buffer aliases the input buffer (input_output_aliases={0: 0}):
    # nothing to read, compute, or write.  NOTE: correctness relies on that
    # aliasing — do not remove input_output_aliases without switching to the
    # DMA copy path below.
    del x_ref, o_ref


def _identity_alias(x: jax.Array) -> jax.Array:
    return pl.pallas_call(
        _noop_kernel,
        out_shape=jax.ShapeDtypeStruct(x.shape, x.dtype),
        in_specs=[pl.BlockSpec(memory_space=pl.ANY)],
        out_specs=pl.BlockSpec(memory_space=pl.ANY),
        input_output_aliases={0: 0},
    )(x)


# -----------------------------------------------------------------------------
# Secondary path: direct HBM->HBM DMA copy (no grid, no VMEM staging).
# -----------------------------------------------------------------------------
def _dma_copy_kernel(x_ref, o_ref):
    # One DMA-engine copy of the whole array, HBM -> HBM.
    def body(sem):
        cp = pltpu.make_async_copy(x_ref, o_ref, sem)
        cp.start()
        cp.wait()

    pl.run_scoped(body, pltpu.SemaphoreType.DMA(()))


def _dma_copy_split_kernel(x_ref, o_ref):
    # Flat (N,) HBM refs, N even.  Each grid step DMAs its contiguous half;
    # with dimension_semantics=("parallel",) the two halves land on the two
    # TensorCores of a v7x chip (sequential, harmless, on v5e/v6e).
    half = x_ref.shape[0] // 2
    start = pl.program_id(0) * half

    def body(sem):
        cp = pltpu.make_async_copy(
            x_ref.at[pl.ds(start, half)],
            o_ref.at[pl.ds(start, half)],
            sem,
        )
        cp.start()
        cp.wait()

    pl.run_scoped(body, pltpu.SemaphoreType.DMA(()))


# Only bother splitting the copy across cores for reasonably large arrays.
_SPLIT_MIN_ELEMS = 1 << 20


def _identity_copy(x: jax.Array, *, split_copy=None) -> jax.Array:
    total = x.size
    nbytes = total * jnp.dtype(x.dtype).itemsize
    cost = pl.CostEstimate(flops=0, transcendentals=0, bytes_accessed=2 * nbytes)

    if split_copy is None:
        split_copy = total >= _SPLIT_MIN_ELEMS
    split_copy = bool(split_copy) and total > 0 and (total % 2 == 0)

    if not split_copy:
        return pl.pallas_call(
            _dma_copy_kernel,
            out_shape=jax.ShapeDtypeStruct(x.shape, x.dtype),
            in_specs=[pl.BlockSpec(memory_space=pl.ANY)],
            out_specs=pl.BlockSpec(memory_space=pl.ANY),
            cost_estimate=cost,
        )(x)

    # Flat view: contiguous halves, no lane/sublane constraints for a DMA.
    x_flat = x.reshape(total)
    y_flat = pl.pallas_call(
        _dma_copy_split_kernel,
        out_shape=jax.ShapeDtypeStruct((total,), x.dtype),
        grid=(2,),
        in_specs=[pl.BlockSpec(memory_space=pl.ANY)],
        out_specs=pl.BlockSpec(memory_space=pl.ANY),
        compiler_params=pltpu.CompilerParams(
            dimension_semantics=("parallel",),
        ),
        cost_estimate=cost,
    )(x_flat)
    return y_flat.reshape(x.shape)


def identity(x: jax.Array, *, use_copy_kernel: bool = False,
             split_copy=None) -> jax.Array:
    """Identity forward pass: returns x unchanged (same shape & dtype).

    use_copy_kernel=False: aliased no-op (zero bytes moved; free when the
    input is donated under jit).
    use_copy_kernel=True:  explicit HBM->HBM DMA copy (split_copy=True splits
    it in two halves so v7x can shard it across its 2 TensorCores).
    """
    if use_copy_kernel:
        return _identity_copy(x, split_copy=split_copy)
    return _identity_alias(x)


if __name__ == "__main__":
    key = jax.random.PRNGKey(0)
    x = jax.random.normal(key, (2, 4, 16, 16), dtype=jnp.float32)

    # Primary (aliased no-op) path.
    y = jax.block_until_ready(identity(x))
    assert y.shape == x.shape and y.dtype == x.dtype
    assert bool(jnp.all(y == x))

    # Secondary path: single HBM->HBM DMA copy.
    y_copy = jax.block_until_ready(identity(x, use_copy_kernel=True))
    assert y_copy.shape == x.shape and y_copy.dtype == x.dtype
    assert bool(jnp.all(y_copy == x))

    # Secondary path, 2-way split variant (v7x megacore-friendly).
    y_split = jax.block_until_ready(
        identity(x, use_copy_kernel=True, split_copy=True))
    assert y_split.shape == x.shape and y_split.dtype == x.dtype
    assert bool(jnp.all(y_split == x))

    print("KERNEL_OK")
</pallas_src>

<mosaic_0001>
module attributes {stable_mosaic.version = 11 : i64} {
  func.func @_noop_kernel(%arg0: memref<2x4x16x16xf32, #tpu.memory_space<any>>, %arg1: memref<2x4x16x16xf32, #tpu.memory_space<any>>) attributes {dimension_semantics = [], scalar_prefetch = 0 : i64, scratch_operands = 0 : i64, tpu.core_type = #tpu.core_type<tc>} {
    return
  }
}

</mosaic_0001>

<llo_original>
// kernel: tpu_custom_call.1
$region0: #{tpu_custom_call.1}
  #allocation0 [shape = 'u32[]', space=smem, size = 0x4, offset = 0x4, fixed_abs, tag = 'smem constant byte address 0x4 - core index']
  #allocation1 [shape = 'u32[144,128]{1,0:T(1,128)}', space=vmem, size = 0x12000, scoped, tag = 'internal scratch']
  %s0 = inlined_call_operand.hbm [shape: f32[2,4,16,16], index: 0, kind: input, shape index: {}, may-alias: {0,1}]
  %s1 = inlined_call_operand.hbm [shape: f32[2,4,16,16], index: 1, kind: output, shape index: {}, may-alias: {0,1}]
  %s2 = sld [smem:[#allocation0]]
  $region2: #{tpu_custom_call.1} parent=0
    _
  %s4 = ssub.s32 1, %s2
  %s5 = scalar_select 0, %s4, %s2

</llo_original>
